<compile_context>
chip_gen: v5e
topology: v5e:2x2
jax: 0.10.0
libtpu: 0.0.40
codegen_flags: <defaults>
</compile_context>

<pallas_src>
import numpy as np
import jax
import jax.numpy as jnp
from jax.experimental import pallas as pl
from jax.experimental.pallas import tpu as pltpu

EPS = 1e-10
SCALAR = 20


def _round_up(x, m):
    return (x + m - 1) // m * m


def _vmem_limit_bytes():
    # Leave headroom below the physical VMEM of the current generation
    # (128 MiB on v5e/v6e, 64 MiB on v7x); fall back to the compiler default.
    try:
        return int(pltpu.get_tpu_info().vmem_capacity_bytes * 3 // 4)
    except Exception:
        return None


# ---------------------------------------------------------------------------
# Host-side glue: Dual Hypergraph Transformation (mirrors DHT in the torch code)
# ---------------------------------------------------------------------------
def dht(edge_index, batch, add_loops=True):
    num_edge = edge_index.shape[1]
    edge_to_node_index = np.repeat(np.arange(num_edge), 2)
    flat = edge_index.T.reshape(-1)
    hyperedge_index = np.stack([edge_to_node_index, flat]).astype(np.int64)
    edge_batch = batch[hyperedge_index[1].reshape(-1, 2)[:, 0]]
    if add_loops:
        bincount = np.bincount(hyperedge_index[1])
        mask = bincount[hyperedge_index[1]] != 1
        max_edge = hyperedge_index[1].max()
        loops = np.stack([np.arange(num_edge),
                          np.arange(max_edge + 1, max_edge + num_edge + 1)])
        hyperedge_index = np.concatenate([hyperedge_index[:, mask], loops], axis=1)
    return hyperedge_index, edge_batch


def build_dense_operators(hyperedge_index, num_dual_nodes):
    """Dense incidence matrix + B^-1 / D^-1 normalizers (HypergraphConv semantics)."""
    num_hyperedges = int(hyperedge_index[1].max()) + 1
    H = np.zeros((num_dual_nodes, num_hyperedges), dtype=np.float32)
    np.add.at(H, (hyperedge_index[0], hyperedge_index[1]), 1.0)
    B = np.bincount(hyperedge_index[1], minlength=num_hyperedges).astype(np.float32)
    D = np.bincount(hyperedge_index[0], minlength=num_dual_nodes).astype(np.float32)
    Binv = np.where(B > 0, 1.0 / np.maximum(B, 1.0), 0.0).reshape(-1, 1).astype(np.float32)
    Dinv = np.where(D > 0, 1.0 / np.maximum(D, 1.0), 0.0).reshape(-1, 1).astype(np.float32)
    return H, Binv, Dinv


def build_propagation_matrix(H, Binv, Dinv):
    """A = diag(Dinv) @ H @ diag(Binv) @ H^T  — fused HypergraphConv propagation, (E, E)."""
    HB = H * Binv.T                       # scale columns by B^-1
    return (Dinv * (HB @ H.T)).astype(np.float32)


# ---------------------------------------------------------------------------
# Pallas kernel: per layer  x <- relu(A_tile @ x @ W + b);  pooled += P_tile @ x
# ---------------------------------------------------------------------------
def make_kernel(num_convs, n_tiles, tile_e, g_pad, f_pad):
    def kernel(ea_ref, a_ref, p_ref, w_ref, b_ref, out_ref, x_cur, x_next):
        l = pl.program_id(0)          # layer axis (outer, true dependency chain)
        t = pl.program_id(1)          # dual-node row-tile axis (inner)

        # Seed the layer-0 activations once.
        @pl.when((l == 0) & (t == 0))
        def _seed():
            x_cur[...] = ea_ref[...].astype(jnp.bfloat16)

        # Fused hypergraph propagation for this row tile:
        #   z = (D^-1 H B^-1 H^T)[rows, :] @ x_prev      (bf16 x bf16 -> f32 MXU)
        z = jnp.dot(a_ref[...], x_cur[...],
                    preferred_element_type=jnp.float32)            # (TILE_E, F_pad)

        # Per-layer linear transform + bias + ReLU (f32 on the VPU).
        x_new = jnp.maximum(
            jnp.dot(z, w_ref[0], preferred_element_type=jnp.float32) + b_ref[0],
            0.0)                                                   # (TILE_E, F_pad)

        # Stash this tile of the next layer's input (bf16 scratch).
        row = pl.multiple_of(t * tile_e, tile_e)
        x_next[pl.ds(row, tile_e), :] = x_new.astype(jnp.bfloat16)

        # global_add_pool: accumulate P[:, rows] @ x_new into the resident,
        # lane-dense per-layer output block (init on the first tile of the layer).
        pool = jnp.dot(p_ref[...], x_new, preferred_element_type=jnp.float32)

        @pl.when(t == 0)
        def _init():
            out_ref[0] = jnp.zeros((g_pad, f_pad), jnp.float32)

        out_ref[0] = out_ref[0] + pool

        # Layer boundary: publish the new activations for the next layer.
        @pl.when((t == n_tiles - 1) & (l < num_convs - 1))
        def _advance():
            x_cur[...] = x_next[...]

    return kernel


def hypergnn_pallas(edge_attr, A, P, params, *, tile_e=128):
    """Forward pass: per layer x <- relu(A @ (x @ W) + b);  out_l = P @ x.

    Returns (G, num_convs * nhid) with readout='concat', pooling='add'.
    tile_e must be a multiple of 128; raise it (e.g. 512) for large E on
    v5e/v6e, keep it smaller on v7x (64 MiB VMEM).
    """
    assert tile_e % 128 == 0
    E, f_in = edge_attr.shape
    G = P.shape[0]
    num_convs = len(params)
    nhid = params[0][0].shape[1]

    f_pad = _round_up(max(f_in, nhid), 128)
    e_pad = _round_up(E, tile_e)
    g_pad = _round_up(G, 8)
    n_tiles = e_pad // tile_e

    # Pad + pack operands.  A / P are cast to bf16 (halves bytes of the dominant
    # operands).  Zero padding keeps the math exact: padded activation rows never
    # reach the output because A's and P's padded columns are zero.
    ea_p = jnp.zeros((e_pad, f_pad), jnp.float32).at[:E, :f_in].set(edge_attr)
    a_p = jnp.zeros((e_pad, e_pad), jnp.float32).at[:E, :E].set(A).astype(jnp.bfloat16)
    p_p = jnp.zeros((g_pad, e_pad), jnp.float32).at[:G, :E].set(P).astype(jnp.bfloat16)
    w_all = jnp.zeros((num_convs, f_pad, f_pad), jnp.float32)
    b_all = jnp.zeros((num_convs, 1, f_pad), jnp.float32)
    for i, (w, b) in enumerate(params):
        w_all = w_all.at[i, : w.shape[0], : w.shape[1]].set(w)
        b_all = b_all.at[i, 0, : b.shape[1]].set(b.reshape(-1))

    grid_spec = pltpu.PrefetchScalarGridSpec(
        num_scalar_prefetch=0,
        grid=(num_convs, n_tiles),
        in_specs=[
            pl.BlockSpec((e_pad, f_pad), lambda l, t: (0, 0)),         # edge_attr (seed)
            pl.BlockSpec((tile_e, e_pad), lambda l, t: (t, 0)),        # A row tile
            pl.BlockSpec((g_pad, tile_e), lambda l, t: (0, t)),        # P column tile
            pl.BlockSpec((1, f_pad, f_pad), lambda l, t: (l, 0, 0)),   # W_l
            pl.BlockSpec((1, 1, f_pad), lambda l, t: (l, 0, 0)),       # b_l
        ],
        out_specs=pl.BlockSpec((1, g_pad, f_pad), lambda l, t: (l, 0, 0)),
        scratch_shapes=[
            pltpu.VMEM((e_pad, f_pad), jnp.bfloat16),   # x_cur  (current layer input)
            pltpu.VMEM((e_pad, f_pad), jnp.bfloat16),   # x_next (next layer input)
        ],
    )

    compiler_params = pltpu.CompilerParams(
        # Both axes carry dependencies (shared activation scratch across the
        # E-tile axis, layer chaining on the layer axis) -> keep them sequential.
        dimension_semantics=("arbitrary", "arbitrary"),
        vmem_limit_bytes=_vmem_limit_bytes(),
    )

    out = pl.pallas_call(
        make_kernel(num_convs, n_tiles, tile_e, g_pad, f_pad),
        out_shape=jax.ShapeDtypeStruct((num_convs, g_pad, f_pad), jnp.float32),
        grid_spec=grid_spec,
        compiler_params=compiler_params,
    )(ea_p, a_p, p_p, w_all, b_all)

    # (num_convs, G_pad, F_pad) lane-dense slab -> (G, num_convs*nhid) concat readout.
    out = out[:, :G, :nhid]
    return jnp.transpose(out, (1, 0, 2)).reshape(G, num_convs * nhid)


# ---------------------------------------------------------------------------
# Pure-JAX references
# ---------------------------------------------------------------------------
def ref_forward_f32(edge_attr, H, Binv, Dinv, P, params):
    """Original HypergraphConv semantics, full f32."""
    x = edge_attr
    pooled = []
    for w, b in params:
        xw = x @ w
        m = (H.T @ xw) * Binv
        x = jnp.maximum((H @ m) * Dinv + b, 0.0)
        pooled.append(P @ x)
    return jnp.concatenate(pooled, axis=1)


def ref_forward_matched(edge_attr, A_b, P_b, params):
    """Same math as the kernel, including the bf16 quantisation of A, P and x."""
    A = A_b.astype(jnp.float32)
    Pf = P_b.astype(jnp.float32)
    x_b = edge_attr.astype(jnp.bfloat16)
    pooled = []
    for w, b in params:
        z = A @ x_b.astype(jnp.float32)
        x = jnp.maximum(z @ w + b, 0.0)
        pooled.append(Pf @ x)
        x_b = x.astype(jnp.bfloat16)
    return jnp.concatenate(pooled, axis=1)


if __name__ == "__main__":
    key = jax.random.PRNGKey(0)
    input_dim = 16        # node feature dim (input_dim_edge = 0 -> use_edge_attr=False)
    hidden_dim = 32
    num_gc_layers = 3

    # Small 2-graph batch: two ring graphs (40 and 44 nodes), directed edges both
    # ways -> E = 168 dual nodes -> two 128-row tiles after padding.
    sizes = [40, 44]
    edges, batch_list = [], []
    off = 0
    for g, n in enumerate(sizes):
        for i in range(n):
            u, v = off + i, off + (i + 1) % n
            edges.append((u, v))
            edges.append((v, u))
        batch_list.extend([g] * n)
        off += n
    edge_index = np.asarray(edges, dtype=np.int64).T            # (2, E)
    batch = np.asarray(batch_list, dtype=np.int64)
    num_nodes = off
    E = edge_index.shape[1]

    keys = jax.random.split(key, 2 + 2 * num_gc_layers)
    kx, kimp, wkeys = keys[0], keys[1], keys[2:]
    x = jax.random.normal(kx, (num_nodes, input_dim), dtype=jnp.float32)
    edge_imp = jax.random.uniform(kimp, (E, 1), dtype=jnp.float32, minval=0.1, maxval=1.0)

    # use_edge_attr == False -> edge_attr from endpoint node features
    edge_attr = (x[edge_index[0]] + x[edge_index[1]]) / 2.0

    hyperedge_index, edge_batch = dht(edge_index, batch)
    num_graphs = int(edge_batch.max()) + 1

    # edge_imp normalisation (torch_scatter.scatter_max path)
    seg_max = jax.ops.segment_max(edge_imp[:, 0], jnp.asarray(edge_batch),
                                  num_segments=num_graphs)
    out_max = seg_max[jnp.asarray(edge_batch)][:, None]
    edge_imp = edge_imp / (out_max + EPS)
    edge_imp = (2.0 * edge_imp - 1.0) / (2.0 * SCALAR) + 1.0
    edge_attr = edge_attr * edge_imp

    H_np, Binv_np, Dinv_np = build_dense_operators(hyperedge_index, E)
    A_np = build_propagation_matrix(H_np, Binv_np, Dinv_np)
    P_np = (edge_batch[None, :] == np.arange(num_graphs)[:, None]).astype(np.float32)

    # deterministic parameter init (glorot-uniform weight, small random bias)
    params = []
    fan_in = input_dim
    for li in range(num_gc_layers):
        kw, kb = wkeys[2 * li], wkeys[2 * li + 1]
        a = float(np.sqrt(6.0 / (fan_in + hidden_dim)))
        w = jax.random.uniform(kw, (fan_in, hidden_dim), minval=-a, maxval=a,
                               dtype=jnp.float32)
        b = 0.1 * jax.random.normal(kb, (1, hidden_dim), dtype=jnp.float32)
        params.append((w, b))
        fan_in = hidden_dim

    A = jnp.asarray(A_np)
    P = jnp.asarray(P_np)

    out = hypergnn_pallas(edge_attr, A, P, params, tile_e=128)
    out = jax.block_until_ready(out)

    # 1) kernel implements the intended math (same bf16 quantisation) — tight check
    ref_q = jax.block_until_ready(
        ref_forward_matched(edge_attr, A.astype(jnp.bfloat16),
                            P.astype(jnp.bfloat16), params))
    np.testing.assert_allclose(np.asarray(out), np.asarray(ref_q), rtol=2e-3, atol=2e-3)

    # 2) fidelity to the original full-f32 HypergraphConv semantics — loose check
    ref = jax.block_until_ready(
        ref_forward_f32(edge_attr, jnp.asarray(H_np), jnp.asarray(Binv_np),
                        jnp.asarray(Dinv_np), P, params))
    np.testing.assert_allclose(np.asarray(out), np.asarray(ref), rtol=5e-2, atol=5e-2)

    print("KERNEL_OK")
</pallas_src>

<mosaic_0001>
module attributes {stable_mosaic.version = 11 : i64} {
  func.func @kernel(%arg0: i32, %arg1: i32, %arg2: memref<256x128xf32, #tpu.memory_space<vmem>>, %arg3: memref<128x256xbf16, #tpu.memory_space<vmem>>, %arg4: memref<8x128xbf16, #tpu.memory_space<vmem>>, %arg5: memref<1x128x128xf32, #tpu.memory_space<vmem>>, %arg6: memref<1x1x128xf32, #tpu.memory_space<vmem>>, %arg7: memref<1x8x128xf32, #tpu.memory_space<vmem>>, %arg8: memref<256x128xbf16, #tpu.memory_space<vmem>>, %arg9: memref<256x128xbf16, #tpu.memory_space<vmem>>) attributes {dimension_semantics = [#tpu.dimension_semantics<arbitrary>, #tpu.dimension_semantics<arbitrary>], iteration_bounds = array<i64: 3, 2>, scalar_prefetch = 0 : i64, scratch_operands = 2 : i64, tpu.core_type = #tpu.core_type<tc>, window_params = [{pipeline_mode = #tpu.pipeline_mode<synchronous>, transform_indices = @transform_0, window_bounds = array<i64: 256, 128>}, {transform_indices = @transform_1, window_bounds = array<i64: 128, 256>}, {transform_indices = @transform_2, window_bounds = array<i64: 8, 128>}, {transform_indices = @transform_3, window_bounds = array<i64: 1, 128, 128>}, {transform_indices = @transform_4, window_bounds = array<i64: 1, 1, 128>}, {transform_indices = @transform_5, window_bounds = array<i64: 1, 8, 128>}]} {
    %c0_i32 = arith.constant 0 : i32
    %0 = arith.cmpi eq, %arg0, %c0_i32 : i32
    %c0_i32_0 = arith.constant 0 : i32
    %1 = arith.cmpi eq, %arg1, %c0_i32_0 : i32
    %2 = arith.andi %0, %1 : i1
    %3 = arith.extui %2 : i1 to i32
    %c0_i32_1 = arith.constant 0 : i32
    %4 = arith.cmpi ne, %3, %c0_i32_1 : i32
    scf.if %4 {
      %c0_26 = arith.constant 0 : index
      %c0_27 = arith.constant 0 : index
      %38 = vector.load %arg2[%c0_26, %c0_27] : memref<256x128xf32, #tpu.memory_space<vmem>>, vector<256x128xf32>
      %39 = arith.truncf %38 : vector<256x128xf32> to vector<256x128xbf16>
      %c0_28 = arith.constant 0 : index
      %c0_29 = arith.constant 0 : index
      %40 = vector.load %arg8[%c0_28, %c0_29] : memref<256x128xbf16, #tpu.memory_space<vmem>>, vector<256x128xbf16>
      tpu.vector_store %arg8[%c0_28, %c0_29], %39 {strides = array<i32>} : memref<256x128xbf16, #tpu.memory_space<vmem>>, vector<256x128xbf16>,
    } else {
    }
    %c0 = arith.constant 0 : index
    %c0_2 = arith.constant 0 : index
    %5 = vector.load %arg3[%c0, %c0_2] : memref<128x256xbf16, #tpu.memory_space<vmem>>, vector<128x256xbf16>
    %c0_3 = arith.constant 0 : index
    %c0_4 = arith.constant 0 : index
    %6 = vector.load %arg8[%c0_3, %c0_4] : memref<256x128xbf16, #tpu.memory_space<vmem>>, vector<256x128xbf16>
    %cst = arith.constant dense<0.000000e+00> : vector<128x128xf32>
    %7 = tpu.matmul %5, %6, %cst {dimension_numbers = #tpu.dot_dimension_numbers<[1], [0], [0], [1], [0, 0, 1, 1], [], []>} : vector<128x256xbf16>, vector<256x128xbf16>, vector<128x128xf32> -> vector<128x128xf32>
    %c0_5 = arith.constant 0 : index
    %c0_6 = arith.constant 0 : index
    %c0_7 = arith.constant 0 : index
    %8 = vector.load %arg5[%c0_5, %c0_6, %c0_7] : memref<1x128x128xf32, #tpu.memory_space<vmem>>, vector<1x128x128xf32>
    %9 = vector.shape_cast %8 : vector<1x128x128xf32> to vector<128x128xf32>
    %cst_8 = arith.constant dense<0.000000e+00> : vector<128x128xf32>
    %10 = tpu.matmul %7, %9, %cst_8 {dimension_numbers = #tpu.dot_dimension_numbers<[1], [0], [0], [1], [0, 0, 1, 1], [], []>} : vector<128x128xf32>, vector<128x128xf32>, vector<128x128xf32> -> vector<128x128xf32>
    %c0_9 = arith.constant 0 : index
    %c0_10 = arith.constant 0 : index
    %c0_11 = arith.constant 0 : index
    %11 = vector.load %arg6[%c0_9, %c0_10, %c0_11] : memref<1x1x128xf32, #tpu.memory_space<vmem>>, vector<1x1x128xf32>
    %12 = vector.shape_cast %11 : vector<1x1x128xf32> to vector<1x128xf32>
    %13 = vector.broadcast %12 : vector<1x128xf32> to vector<128x128xf32>
    %14 = arith.addf %10, %13 : vector<128x128xf32>
    %cst_12 = arith.constant 0.000000e+00 : f32
    %15 = vector.broadcast %cst_12 : f32 to vector<128x128xf32>
    %16 = arith.maximumf %14, %15 : vector<128x128xf32>
    %c128_i32 = arith.constant 128 : i32
    %17 = arith.muli %arg1, %c128_i32 : i32
    %18 = tpu.assume_multiple %17, 128 : i32
    %19 = arith.truncf %16 : vector<128x128xf32> to vector<128x128xbf16>
    %20 = arith.index_cast %18 : i32 to index
    %c0_13 = arith.constant 0 : index
    %21 = vector.load %arg9[%20, %c0_13] : memref<256x128xbf16, #tpu.memory_space<vmem>>, vector<128x128xbf16>
    tpu.vector_store %arg9[%20, %c0_13], %19 {strides = array<i32>} : memref<256x128xbf16, #tpu.memory_space<vmem>>, vector<128x128xbf16>,
    %c0_14 = arith.constant 0 : index
    %c0_15 = arith.constant 0 : index
    %22 = vector.load %arg4[%c0_14, %c0_15] : memref<8x128xbf16, #tpu.memory_space<vmem>>, vector<8x128xbf16>
    %cst_16 = arith.constant dense<0.000000e+00> : vector<8x128xf32>
    %23 = tpu.matmul %22, %16, %cst_16 {dimension_numbers = #tpu.dot_dimension_numbers<[1], [0], [0], [1], [0, 0, 1, 1], [], []>} : vector<8x128xbf16>, vector<128x128xf32>, vector<8x128xf32> -> vector<8x128xf32>
    %c0_i32_17 = arith.constant 0 : i32
    %24 = arith.cmpi eq, %arg1, %c0_i32_17 : i32
    %25 = arith.extui %24 : i1 to i32
    %c0_i32_18 = arith.constant 0 : i32
    %26 = arith.cmpi ne, %25, %c0_i32_18 : i32
    scf.if %26 {
      %cst_26 = arith.constant 0.000000e+00 : f32
      %38 = vector.broadcast %cst_26 : f32 to vector<8x128xf32>
      %c0_27 = arith.constant 0 : index
      %c0_28 = arith.constant 0 : index
      %c0_29 = arith.constant 0 : index
      %39 = vector.load %arg7[%c0_27, %c0_28, %c0_29] : memref<1x8x128xf32, #tpu.memory_space<vmem>>, vector<1x8x128xf32>
      %40 = vector.shape_cast %39 : vector<1x8x128xf32> to vector<8x128xf32>
      %41 = vector.shape_cast %38 : vector<8x128xf32> to vector<1x8x128xf32>
      tpu.vector_store %arg7[%c0_27, %c0_28, %c0_29], %41 {strides = array<i32>} : memref<1x8x128xf32, #tpu.memory_space<vmem>>, vector<1x8x128xf32>,
    } else {
    }
    %c0_19 = arith.constant 0 : index
    %c0_20 = arith.constant 0 : index
    %c0_21 = arith.constant 0 : index
    %27 = vector.load %arg7[%c0_19, %c0_20, %c0_21] : memref<1x8x128xf32, #tpu.memory_space<vmem>>, vector<1x8x128xf32>
    %28 = vector.shape_cast %27 : vector<1x8x128xf32> to vector<8x128xf32>
    %29 = arith.addf %28, %23 : vector<8x128xf32>
    %c0_22 = arith.constant 0 : index
    %c0_23 = arith.constant 0 : index
    %c0_24 = arith.constant 0 : index
    %30 = vector.load %arg7[%c0_22, %c0_23, %c0_24] : memref<1x8x128xf32, #tpu.memory_space<vmem>>, vector<1x8x128xf32>
    %31 = vector.shape_cast %30 : vector<1x8x128xf32> to vector<8x128xf32>
    %32 = vector.shape_cast %29 : vector<8x128xf32> to vector<1x8x128xf32>
    tpu.vector_store %arg7[%c0_22, %c0_23, %c0_24], %32 {strides = array<i32>} : memref<1x8x128xf32, #tpu.memory_space<vmem>>, vector<1x8x128xf32>,
    %c1_i32 = arith.constant 1 : i32
    %33 = arith.cmpi eq, %arg1, %c1_i32 : i32
    %c2_i32 = arith.constant 2 : i32
    %34 = arith.cmpi slt, %arg0, %c2_i32 : i32
    %35 = arith.andi %33, %34 : i1
    %36 = arith.extui %35 : i1 to i32
    %c0_i32_25 = arith.constant 0 : i32
    %37 = arith.cmpi ne, %36, %c0_i32_25 : i32
    scf.if %37 {
      %c0_26 = arith.constant 0 : index
      %c0_27 = arith.constant 0 : index
      %38 = vector.load %arg9[%c0_26, %c0_27] : memref<256x128xbf16, #tpu.memory_space<vmem>>, vector<256x128xbf16>
      %c0_28 = arith.constant 0 : index
      %c0_29 = arith.constant 0 : index
      %39 = vector.load %arg8[%c0_28, %c0_29] : memref<256x128xbf16, #tpu.memory_space<vmem>>, vector<256x128xbf16>
      tpu.vector_store %arg8[%c0_28, %c0_29], %38 {strides = array<i32>} : memref<256x128xbf16, #tpu.memory_space<vmem>>, vector<256x128xbf16>,
    } else {
    }
    return
  }
  func.func @transform_0(%arg0: i32, %arg1: i32) -> (i32, i32) {
    %c0_i32 = arith.constant 0 : i32
    %c0_i32_0 = arith.constant 0 : i32
    %c0_i32_1 = arith.constant 0 : i32
    return %c0_i32, %c0_i32_0 : i32, i32
  }
  func.func @transform_1(%arg0: i32, %arg1: i32) -> (i32, i32) {
    %c0_i32 = arith.constant 0 : i32
    %c0_i32_0 = arith.constant 0 : i32
    return %arg1, %c0_i32 : i32, i32
  }
  func.func @transform_2(%arg0: i32, %arg1: i32) -> (i32, i32) {
    %c0_i32 = arith.constant 0 : i32
    %c0_i32_0 = arith.constant 0 : i32
    return %c0_i32, %arg1 : i32, i32
  }
  func.func @transform_3(%arg0: i32, %arg1: i32) -> (i32, i32, i32) {
    %c0_i32 = arith.constant 0 : i32
    %c0_i32_0 = arith.constant 0 : i32
    %c0_i32_1 = arith.constant 0 : i32
    return %arg0, %c0_i32, %c0_i32_0 : i32, i32, i32
  }
  func.func @transform_4(%arg0: i32, %arg1: i32) -> (i32, i32, i32) {
    %c0_i32 = arith.constant 0 : i32
    %c0_i32_0 = arith.constant 0 : i32
    %c0_i32_1 = arith.constant 0 : i32
    return %arg0, %c0_i32, %c0_i32_0 : i32, i32, i32
  }
  func.func @transform_5(%arg0: i32, %arg1: i32) -> (i32, i32, i32) {
    %c0_i32 = arith.constant 0 : i32
    %c0_i32_0 = arith.constant 0 : i32
    %c0_i32_1 = arith.constant 0 : i32
    return %arg0, %c0_i32, %c0_i32_0 : i32, i32, i32
  }
}

</mosaic_0001>

<llo_original>
// kernel: tpu_custom_call.1
$region0: #{tpu_custom_call.1}
  #allocation0 [shape = 'u32[]', space=smem, size = 0x4, offset = 0x4, fixed_abs, tag = 'smem constant byte address 0x4 - core index']
  #allocation1 [shape = 'u32[72,128]{1,0:T(1,128)}', space=vmem, size = 0x9000, scoped, tag = 'internal scratch']
  #allocation2 [shape = 'bf16[256,128]{1,0:T(8,128)(2,1)}', space=vmem, size = 0x10000, scoped, tag = 'scratch operand']
  #allocation3 [shape = 'bf16[256,128]{1,0:T(8,128)(2,1)}', space=vmem, size = 0x10000, scoped, tag = 'scratch operand']
  %s0 = inlined_call_operand.hbm [shape: f32[256,128], index: 0, kind: input, shape index: {}]
  %s1 = inlined_call_operand.hbm [shape: bf16[256,256], index: 1, kind: input, shape index: {}]
  %s2 = inlined_call_operand.hbm [shape: bf16[8,256], index: 2, kind: input, shape index: {}]
  %s3 = inlined_call_operand.hbm [shape: f32[3,128,128], index: 3, kind: input, shape index: {}]
  %s4 = inlined_call_operand.vmem [shape: f32[3,1,128], index: 4, kind: input, shape index: {}]
  %s5 = inlined_call_operand.hbm [shape: f32[3,8,128], index: 5, kind: output, shape index: {}]
  %s6 = sld [smem:[#allocation0]]
  $region81: #{tpu_custom_call.1} parent=0
    _
  %s8 = ssub.s32 1, %s6
  %s9 = scalar_select 0, %s8, %s6
  $region1: #{tpu_custom_call.1} parent=0
    #allocation4 [shape = 'u8[131072]{0}', space=vmem, size = 0x20000, scoped, tag = 'input window, operand 0, single buffered']
    #allocation5 [shape = 's32[2]{0}', space=sflag, size = 0x8, scoped, tag = 'scoped memory for tpu_custom_call.1']
    #allocation6 [shape = 's32[2]{0}', space=sflag, size = 0x8, scoped, tag = 'scoped memory for tpu_custom_call.1']
    #allocation7 [shape = 'u8[131072]{0}', space=vmem, size = 0x20000, scoped, tag = 'input window, operand 1']
    #allocation8 [shape = 's32[2]{0}', space=sflag, size = 0x8, scoped, tag = 'scoped memory for tpu_custom_call.1']
    #allocation9 [shape = 'u8[4096]{0}', space=vmem, size = 0x1000, scoped, tag = 'input window, operand 2']
    #allocation10 [shape = 'u8[131072]{0}', space=vmem, size = 0x20000, scoped, tag = 'input window, operand 3']
    #allocation11 [shape = 's32[2]{0}', space=sflag, size = 0x8, scoped, tag = 'scoped memory for tpu_custom_call.1']
    #allocation12 [shape = 'u8[8192]{0}', space=vmem, size = 0x2000, scoped, tag = 'output window, operand 0']
    %10 = vsyncpa [#allocation5], 0
    %11 = vsyncpa [#allocation8], 0
    %s12 = scalar_lea.sflag [#allocation8], 1
    %13 = vsyncpa %s12, 0
    %14 = vsyncpa [#allocation11], 0
    %s15 = scalar_lea.sflag [#allocation11], 1
    %16 = vsyncpa %s15, 0
    %17 = vsyncpa [#allocation6], 0
    %s18 = scalar_lea.sflag [#allocation6], 1
    %19 = vsyncpa %s18, 0
    loop: start=0, step=1, limit=8
    $region2: #{tpu_custom_call.1} parent=1 // loop_pre_header
      _
    $region3: #{tpu_custom_call.1} parent=1 // loop_header
      %s21 = sphi 0, %s25
      %p22 = scmp.ge.s32.totalorder %s21, 8
      %s28 = sphi 0, %s40
      %s29 = sphi 0, %s36
      %s30 = sphi 0, %s28
      %s31 = sphi 0, %s29
      %s32 = sphi 0, %s30
      %s33 = sphi 0, %s31
      %s41 = sphi 0, %s41
      %s43 = sphi 0, %s41
      %s44 = sphi 0, %s43
      %s58 = sphi 0, %s44
      %s64 = sphi 0, %s66
      %s67 = sphi 0, %s64
      %s68 = sphi 0, %s67
      %s84 = sphi 0, %s68
      %s90 = sphi 0, %s92
      %s93 = sphi 0, %s90
      %s94 = sphi 0, %s93
      %s110 = sphi 0, %s94
      %s116 = sphi 0, %s118
      %s119 = sphi 0, %s116
      %s120 = sphi 0, %s119
      %s136 = sphi 0, %s120
      %s142 = sphi 0, %s144
      %s145 = sphi 0, %s142
      %s146 = sphi 0, %s145
      %s162 = sphi 0, %s146
      %s168 = sphi 0, %s170
      %s171 = sphi 0, %s168
      %s172 = sphi 0, %s171
      %s188 = sphi 0, %s172
    $region4: #{tpu_custom_call.1} parent=1 // loop_header_branch
      %24 = sbr.rel (%p22) target = $region8
    $region5: #{tpu_custom_call.1} parent=1 // loop_body
      %s26 = ssub.s32 %s21, 1
      %s27 = ssub.s32 %s21, 2
      %s34 = sadd.s32 1, %s29
      %p35 = scmp.ge.s32.totalorder %s34, 2
      %s36 = scalar_select %p35, 0, %s34
      %s37 = sadd.s32 1, %s28
      %s38 = scalar_select %p35, %s37, %s28
      %p39 = scmp.ge.s32.totalorder %s38, 3
      %s40 = scalar_select %p39, 0, %s38
      %s42 = sadd.s32 %s41, 1
      %p45 = scmp.eq.s32.totalorder %s21, 5
      %p46 = scmp.ne.s32.totalorder %s41, %s43
      %p47 = scmp.eq.s32.totalorder %s21, 0
      %p48 = por %p46, %p47
      %p49 = scmp.ne.s32.totalorder %s41, %s43
      %p50 = scmp.eq.s32.totalorder %s26, 5
      %p51 = por %p49, %p50
      %p52 = scmp.ne.s32.totalorder %s43, %s44
      %p53 = scmp.eq.s32.totalorder %s26, 0
      %p54 = por %p52, %p53
      %p55 = scmp.ne.s32.totalorder %s43, %s44
      %p56 = scmp.eq.s32.totalorder %s27, 5
      %p57 = por %p55, %p56
      %p59 = scmp.ne.s32.totalorder %s44, %s58
      %p60 = scmp.eq.s32.totalorder %s27, 0
      %p61 = por %p59, %p60
      %s62 = ssub.s32 %s29, %s36
      %p63 = scmp.eq.s32.totalorder %s62, 0
      %s65 = sadd.s32 %s64, 1
      %s66 = scalar_select %p63, %s64, %s65
      %p69 = pneg %p63
      %p70 = scmp.eq.s32.totalorder %s21, 5
      %p71 = por %p69, %p70
      %p72 = scmp.ne.s32.totalorder %s64, %s67
      %p73 = scmp.eq.s32.totalorder %s21, 0
      %p74 = por %p72, %p73
      %p75 = scmp.ne.s32.totalorder %s64, %s67
      %p76 = scmp.eq.s32.totalorder %s26, 5
      %p77 = por %p75, %p76
      %p78 = scmp.ne.s32.totalorder %s67, %s68
      %p79 = scmp.eq.s32.totalorder %s26, 0
      %p80 = por %p78, %p79
      %p81 = scmp.ne.s32.totalorder %s67, %s68
      %p82 = scmp.eq.s32.totalorder %s27, 5
      %p83 = por %p81, %p82
      %p85 = scmp.ne.s32.totalorder %s68, %s84
      %p86 = scmp.eq.s32.totalorder %s27, 0
      %p87 = por %p85, %p86
      %s88 = ssub.s32 %s29, %s36
      %p89 = scmp.eq.s32.totalorder %s88, 0
      %s91 = sadd.s32 %s90, 1
      %s92 = scalar_select %p89, %s90, %s91
      %p95 = pneg %p89
      %p96 = scmp.eq.s32.totalorder %s21, 5
      %p97 = por %p95, %p96
      %p98 = scmp.ne.s32.totalorder %s90, %s93
      %p99 = scmp.eq.s32.totalorder %s21, 0
      %p100 = por %p98, %p99
      %p101 = scmp.ne.s32.totalorder %s90, %s93
      %p102 = scmp.eq.s32.totalorder %s26, 5
      %p103 = por %p101, %p102
      %p104 = scmp.ne.s32.totalorder %s93, %s94
      %p105 = scmp.eq.s32.totalorder %s26, 0
      %p106 = por %p104, %p105
      %p107 = scmp.ne.s32.totalorder %s93, %s94
      %p108 = scmp.eq.s32.totalorder %s27, 5
      %p109 = por %p107, %p108
      %p111 = scmp.ne.s32.totalorder %s94, %s110
      %p112 = scmp.eq.s32.totalorder %s27, 0
      %p113 = por %p111, %p112
      %s114 = ssub.s32 %s28, %s40
      %p115 = scmp.eq.s32.totalorder %s114, 0
      %s117 = sadd.s32 %s116, 1
      %s118 = scalar_select %p115, %s116, %s117
      %p121 = pneg %p115
      %p122 = scmp.eq.s32.totalorder %s21, 5
      %p123 = por %p121, %p122
      %p124 = scmp.ne.s32.totalorder %s116, %s119
      %p125 = scmp.eq.s32.totalorder %s21, 0
      %p126 = por %p124, %p125
      %p127 = scmp.ne.s32.totalorder %s116, %s119
      %p128 = scmp.eq.s32.totalorder %s26, 5
      %p129 = por %p127, %p128
      %p130 = scmp.ne.s32.totalorder %s119, %s120
      %p131 = scmp.eq.s32.totalorder %s26, 0
      %p132 = por %p130, %p131
      %p133 = scmp.ne.s32.totalorder %s119, %s120
      %p134 = scmp.eq.s32.totalorder %s27, 5
      %p135 = por %p133, %p134
      %p137 = scmp.ne.s32.totalorder %s120, %s136
      %p138 = scmp.eq.s32.totalorder %s27, 0
      %p139 = por %p137, %p138
      %s140 = ssub.s32 %s28, %s40
      %p141 = scmp.eq.s32.totalorder %s140, 0
      %s143 = sadd.s32 %s142, 1
      %s144 = scalar_select %p141, %s142, %s143
      %p147 = pneg %p141
      %p148 = scmp.eq.s32.totalorder %s21, 5
      %p149 = por %p147, %p148
      %p150 = scmp.ne.s32.totalorder %s142, %s145
      %p151 = scmp.eq.s32.totalorder %s21, 0
      %p152 = por %p150, %p151
      %p153 = scmp.ne.s32.totalorder %s142, %s145
      %p154 = scmp.eq.s32.totalorder %s26, 5
      %p155 = por %p153, %p154
      %p156 = scmp.ne.s32.totalorder %s145, %s146
      %p157 = scmp.eq.s32.totalorder %s26, 0
      %p158 = por %p156, %p157
      %p159 = scmp.ne.s32.totalorder %s145, %s146
      %p160 = scmp.eq.s32.totalorder %s27, 5
      %p161 = por %p159, %p160
      %p163 = scmp.ne.s32.totalorder %s146, %s162
      %p164 = scmp.eq.s32.totalorder %s27, 0
      %p165 = por %p163, %p164
      %s166 = ssub.s32 %s28, %s40
      %p167 = scmp.eq.s32.totalorder %s166, 0
      %s169 = sadd.s32 %s168, 1
      %s170 = scalar_select %p167, %s168, %s169
      %p173 = pneg %p167
      %p174 = scmp.eq.s32.totalorder %s21, 5
      %p175 = por %p173, %p174
      %p176 = scmp.ne.s32.totalorder %s168, %s171
      %p177 = scmp.eq.s32.totalorder %s21, 0
      %p178 = por %p176, %p177
      %p179 = scmp.ne.s32.totalorder %s168, %s171
      %p180 = scmp.eq.s32.totalorder %s26, 5
      %p181 = por %p179, %p180
      %p182 = scmp.ne.s32.totalorder %s171, %s172
      %p183 = scmp.eq.s32.totalorder %s26, 0
      %p184 = por %p182, %p183
      %p185 = scmp.ne.s32.totalorder %s171, %s172
      %p186 = scmp.eq.s32.totalorder %s27, 5
      %p187 = por %p185, %p186
      %p189 = scmp.ne.s32.totalorder %s172, %s188
      %p190 = scmp.eq.s32.totalorder %s27, 0
      %p191 = por %p189, %p190
      %p192 = scmp.le.s32.totalorder 1, %s21
      %p193 = scmp.lt.s32.totalorder %s21, 7
      %p194 = pnand %p192, %p193
      %p195 = pneg %p194
      // Predicated region
      $region9: #{tpu_custom_call.1} parent=5 // pred_check
        _
      $region10: #{tpu_custom_call.1} parent=5 // pred_check_branch
        %197 = sbr.rel (%p194) target = $region12
      $region11: #{tpu_custom_call.1} parent=5 // pred_region
        %s198 = ssub.s32 %s21, 1
        // Predicated region
        $region13: #{tpu_custom_call.1} parent=11 // pred_check
          %p199 = pneg %p54
        $region14: #{tpu_custom_call.1} parent=11 // pred_check_branch
          %201 = sbr.rel (%p199) target = $region16
        $region15: #{tpu_custom_call.1} parent=11 // pred_region
          %203 = vsyncadd [#allocation5], 0
          %s204 = sshll.u32 %s0, 4
          %s205 = int_to_ptr.hbm [resolvable:$true] %s204
          %s206 = sshll.u32 [#allocation4], 4
          %s207 = int_to_ptr.vmem [resolvable:$true] %s206
          %212 = dma.hbm_to_vmem [thread:$0]  %s205, 4096, %s207, [#allocation5], 128, 128, 8
        $region16: #{tpu_custom_call.1} parent=11 // pred_fallthru
          _
      $region12: #{tpu_custom_call.1} parent=5 // pred_fallthru
        _
      %p213 = scmp.lt.s32.totalorder %s21, 6
      // Predicated region
      $region17: #{tpu_custom_call.1} parent=5 // pred_check
        %p214 = pneg %p213
      $region18: #{tpu_custom_call.1} parent=5 // pred_check_branch
        %216 = sbr.rel (%p214) target = $region20
      $region19: #{tpu_custom_call.1} parent=5 // pred_region
        // Predicated region
        $region21: #{tpu_custom_call.1} parent=19 // pred_check
          %p217 = pneg %p74
        $region22: #{tpu_custom_call.1} parent=19 // pred_check_branch
          %219 = sbr.rel (%p217) target = $region24
        $region23: #{tpu_custom_call.1} parent=19 // pred_region
          %s220 = sand.u32 %s21, 1
          %s221 = scalar_lea.sflag [#allocation8], %s220
          %s222 = sand.u32 %s64, 1
          %s223 = smul.addr %s222, 128
          %s224 = scalar_lea.vmem [#allocation7], %s223
          %s225 = smul.u32 16, %s29
          %227 = vsyncadd %s221, 0
          %s228 = smul.addr %s225, 2
          %s229 = smul.addr %s228, 4
          %s230 = scalar_lea.hbm %s1, %s229
          %s231 = sshll.u32 %s230, 4
          %s232 = int_to_ptr.hbm [resolvable:$true] %s231
          %s233 = sshll.u32 %s224, 4
          %s234 = int_to_ptr.vmem [resolvable:$true] %s233
          %239 = dma.hbm_to_vmem [thread:$0]  %s232, 2048, %s234, %s221, 128, 128, 8
        $region24: #{tpu_custom_call.1} parent=19 // pred_fallthru
          _
        // Predicated region
        $region25: #{tpu_custom_call.1} parent=19 // pred_check
          %p240 = pneg %p100
        $region26: #{tpu_custom_call.1} parent=19 // pred_check_branch
          %242 = sbr.rel (%p240) target = $region28
        $region27: #{tpu_custom_call.1} parent=19 // pred_region
          %s243 = sand.u32 %s21, 1
          %s244 = scalar_lea.sflag [#allocation8], %s243
          %s245 = sand.u32 %s90, 1
          %s246 = smul.addr %s245, 4
          %s247 = scalar_lea.vmem [#allocation9], %s246
          %249 = vsyncadd %s244, 0
          %s250 = smul.addr %s29, 4
          %s251 = scalar_lea.hbm %s2, %s250
          %s253 = sshll.u32 %s251, 4
          %s254 = int_to_ptr.hbm [resolvable:$true] %s253
          %s255 = sshll.u32 %s247, 4
          %s256 = int_to_ptr.vmem [resolvable:$true] %s255
          %258 = dma.hbm_to_vmem [thread:$0]  %s254, 64, %s256, %s244
        $region28: #{tpu_custom_call.1} parent=19 // pred_fallthru
          _
        // Predicated region
        $region29: #{tpu_custom_call.1} parent=19 // pred_check
          %p259 = pneg %p126
        $region30: #{tpu_custom_call.1} parent=19 // pred_check_branch
          %261 = sbr.rel (%p259) target = $region32
        $region31: #{tpu_custom_call.1} parent=19 // pred_region
          %s262 = sand.u32 %s116, 1
          %s263 = scalar_lea.sflag [#allocation11], %s262
          %s264 = sand.u32 %s116, 1
          %s265 = smul.addr %s264, 128
          %s266 = scalar_lea.vmem [#allocation10], %s265
          %268 = vsyncadd %s263, 0
          %s269 = smul.addr %s28, 16
          %s270 = smul.addr %s269, 8
          %s271 = scalar_lea.hbm %s3, %s270
          %s272 = sshll.u32 %s271, 4
          %s273 = int_to_ptr.hbm [resolvable:$true] %s272
          %s274 = sshll.u32 %s266, 4
          %s275 = int_to_ptr.vmem [resolvable:$true] %s274
          %280 = dma.hbm_to_vmem [thread:$0]  %s273, 2048, %s275, %s263, 128, 128, 8
        $region32: #{tpu_custom_call.1} parent=19 // pred_fallthru
          _
        // Predicated region
        $region33: #{tpu_custom_call.1} parent=19 // pred_check
          %p281 = pneg %p152
        $region34: #{tpu_custom_call.1} parent=19 // pred_check_branch
          %283 = sbr.rel (%p281) target = $region36
        $region35: #{tpu_custom_call.1} parent=19 // pred_region
          %p284 = scmp.lt.s32.totalorder %s28, 2
          %s285 = scalar_select %p284, %s28, 2
          %s286 = scalar_lea.vmem %s4, %s285
        $region36: #{tpu_custom_call.1} parent=19 // pred_fallthru
          _
      $region20: #{tpu_custom_call.1} parent=5 // pred_fallthru
        _
      %p287 = scmp.le.s32.totalorder 1, %s21
      %p288 = scmp.lt.s32.totalorder %s21, 7
      %p289 = pnand %p287, %p288
      %p290 = pneg %p289
      // Predicated region
      $region37: #{tpu_custom_call.1} parent=5 // pred_check
        _
      $region38: #{tpu_custom_call.1} parent=5 // pred_check_branch
        %292 = sbr.rel (%p289) target = $region40
      $region39: #{tpu_custom_call.1} parent=5 // pred_region
        %s293 = ssub.s32 %s21, 1
        // Predicated region
        $region41: #{tpu_custom_call.1} parent=39 // pred_check
          %p294 = pneg %p54
        $region42: #{tpu_custom_call.1} parent=39 // pred_check_branch
          %296 = sbr.rel (%p294) target = $region44
        $region43: #{tpu_custom_call.1} parent=39 // pred_region
          %298 = dma.done [#allocation5], 4096
        $region44: #{tpu_custom_call.1} parent=39 // pred_fallthru
          _
        %s299 = sand.u32 %s26, 1
        %s300 = scalar_lea.sflag [#allocation8], %s299
        %s301 = sand.u32 %s67, 1
        %s302 = smul.addr %s301, 128
        %s303 = scalar_lea.vmem [#allocation7], %s302
        // Predicated region
        $region45: #{tpu_custom_call.1} parent=39 // pred_check
          %p304 = pneg %p80
        $region46: #{tpu_custom_call.1} parent=39 // pred_check_branch
          %306 = sbr.rel (%p304) target = $region48
        $region47: #{tpu_custom_call.1} parent=39 // pred_region
          %308 = dma.done %s300, 2048
        $region48: #{tpu_custom_call.1} parent=39 // pred_fallthru
          _
        %s309 = sand.u32 %s26, 1
        %s310 = scalar_lea.sflag [#allocation8], %s309
        %s311 = sand.u32 %s93, 1
        %s312 = smul.addr %s311, 4
        %s313 = scalar_lea.vmem [#allocation9], %s312
        // Predicated region
        $region49: #{tpu_custom_call.1} parent=39 // pred_check
          %p314 = pneg %p106
        $region50: #{tpu_custom_call.1} parent=39 // pred_check_branch
          %316 = sbr.rel (%p314) target = $region52
        $region51: #{tpu_custom_call.1} parent=39 // pred_region
          %318 = dma.done %s310, 64
        $region52: #{tpu_custom_call.1} parent=39 // pred_fallthru
          _
        %s319 = sand.u32 %s119, 1
        %s320 = scalar_lea.sflag [#allocation11], %s319
        %s321 = sand.u32 %s119, 1
        %s322 = smul.addr %s321, 128
        %s323 = scalar_lea.vmem [#allocation10], %s322
        // Predicated region
        $region53: #{tpu_custom_call.1} parent=39 // pred_check
          %p324 = pneg %p132
        $region54: #{tpu_custom_call.1} parent=39 // pred_check_branch
          %326 = sbr.rel (%p324) target = $region56
        $region55: #{tpu_custom_call.1} parent=39 // pred_region
          %328 = dma.done %s320, 2048
        $region56: #{tpu_custom_call.1} parent=39 // pred_fallthru
          _
        %p329 = pneg %p54
        %p330 = pneg %p51
        %s331 = sand.u32 %s26, 1
        %s332 = scalar_lea.sflag [#allocation8], %s331
        %s333 = sand.u32 %s67, 1
        %s334 = smul.addr %s333, 128
        %s335 = scalar_lea.vmem [#allocation7], %s334
        %p336 = pneg %p80
        %p337 = pneg %p77
        %s338 = sand.u32 %s26, 1
        %s339 = scalar_lea.sflag [#allocation8], %s338
        %s340 = sand.u32 %s93, 1
        %s341 = smul.addr %s340, 4
        %s342 = scalar_lea.vmem [#allocation9], %s341
        %p343 = pneg %p106
        %p344 = pneg %p103
        %s345 = sand.u32 %s119, 1
        %s346 = scalar_lea.sflag [#allocation11], %s345
        %s347 = sand.u32 %s119, 1
        %s348 = smul.addr %s347, 128
        %s349 = scalar_lea.vmem [#allocation10], %s348
        %p350 = pneg %p132
        %p351 = pneg %p129
        %p352 = scmp.lt.s32.totalorder %s30, 2
        %s353 = scalar_select %p352, %s30, 2
        %s354 = scalar_lea.vmem %s4, %s353
        %p355 = pneg %p158
        %p356 = pneg %p155
        %p357 = pneg %p184
        %p358 = pneg %p181
        %s359 = sand.u32 %s171, 1
        %s360 = scalar_lea.sflag [#allocation6], %s359
        %s361 = sand.u32 %s171, 1
        %s362 = smul.addr %s361, 8
        %s363 = scalar_lea.vmem [#allocation12], %s362
        %s364 = smul.u32 16, %s31
        %p365 = scmp.lt.s32.totalorder %s30, 2
        %s366 = scalar_select %p365, %s30, 2
        %s367 = scalar_lea.vmem %s4, %s366
        %p368 = scmp.eq.s32.totalorder %s30, 0
        %p369 = scmp.eq.s32.totalorder %s31, 0
        %p370 = pnand %p368, %p369
        %p371 = pneg %p370
        // Predicated region
        $region57: #{tpu_custom_call.1} parent=39 // pred_check
          _
        $region58: #{tpu_custom_call.1} parent=39 // pred_check_branch
          %373 = sbr.rel (%p370) target = $region60
        $region59: #{tpu_custom_call.1} parent=39 // pred_region
          %v374 = vld [vmem:[#allocation4] sm:$0xff]
          %v375 = vld [vmem:[#allocation4 + $0x8] sm:$0xff]
          %v376 = vld [vmem:[#allocation4 + $0x10] sm:$0xff]
          %v377 = vld [vmem:[#allocation4 + $0x18] sm:$0xff]
          %v378 = vld [vmem:[#allocation4 + $0x20] sm:$0xff]
          %v379 = vld [vmem:[#allocation4 + $0x28] sm:$0xff]
          %v380 = vld [vmem:[#allocation4 + $0x30] sm:$0xff]
          %v381 = vld [vmem:[#allocation4 + $0x38] sm:$0xff]
          %v382 = vld [vmem:[#allocation4 + $0x40] sm:$0xff]
          %v383 = vld [vmem:[#allocation4 + $0x48] sm:$0xff]
          %v384 = vld [vmem:[#allocation4 + $0x50] sm:$0xff]
          %v385 = vld [vmem:[#allocation4 + $0x58] sm:$0xff]
          %v386 = vld [vmem:[#allocation4 + $0x60] sm:$0xff]
          %v387 = vld [vmem:[#allocation4 + $0x68] sm:$0xff]
          %v388 = vld [vmem:[#allocation4 + $0x70] sm:$0xff]
          %v389 = vld [vmem:[#allocation4 + $0x78] sm:$0xff]
          %v390 = vld [vmem:[#allocation4 + $0x80] sm:$0xff]
          %v391 = vld [vmem:[#allocation4 + $0x88] sm:$0xff]
          %v392 = vld [vmem:[#allocation4 + $0x90] sm:$0xff]
          %v393 = vld [vmem:[#allocation4 + $0x98] sm:$0xff]
          %v394 = vld [vmem:[#allocation4 + $0xa0] sm:$0xff]
          %v395 = vld [vmem:[#allocation4 + $0xa8] sm:$0xff]
          %v396 = vld [vmem:[#allocation4 + $0xb0] sm:$0xff]
          %v397 = vld [vmem:[#allocation4 + $0xb8] sm:$0xff]
          %v398 = vld [vmem:[#allocation4 + $0xc0] sm:$0xff]
          %v399 = vld [vmem:[#allocation4 + $0xc8] sm:$0xff]
          %v400 = vld [vmem:[#allocation4 + $0xd0] sm:$0xff]
          %v401 = vld [vmem:[#allocation4 + $0xd8] sm:$0xff]
          %v402 = vld [vmem:[#allocation4 + $0xe0] sm:$0xff]
          %v403 = vld [vmem:[#allocation4 + $0xe8] sm:$0xff]
          %v404 = vld [vmem:[#allocation4 + $0xf0] sm:$0xff]
          %v405 = vld [vmem:[#allocation4 + $0xf8] sm:$0xff]
          %v406 = vpack.c.bf16 %v374, %v374
          %v407 = vpack.c.bf16 %v375, %v375
          %v408 = vpack.c.bf16 %v376, %v376
          %v409 = vpack.c.bf16 %v377, %v377
          %v410 = vpack.c.bf16 %v378, %v378
          %v411 = vpack.c.bf16 %v379, %v379
          %v412 = vpack.c.bf16 %v380, %v380
          %v413 = vpack.c.bf16 %v381, %v381
          %v414 = vpack.c.bf16 %v382, %v382
          %v415 = vpack.c.bf16 %v383, %v383
          %v416 = vpack.c.bf16 %v384, %v384
          %v417 = vpack.c.bf16 %v385, %v385
          %v418 = vpack.c.bf16 %v386, %v386
          %v419 = vpack.c.bf16 %v387, %v387
          %v420 = vpack.c.bf16 %v388, %v388
          %v421 = vpack.c.bf16 %v389, %v389
          %v422 = vpack.c.bf16 %v390, %v390
          %v423 = vpack.c.bf16 %v391, %v391
          %v424 = vpack.c.bf16 %v392, %v392
          %v425 = vpack.c.bf16 %v393, %v393
          %v426 = vpack.c.bf16 %v394, %v394
          %v427 = vpack.c.bf16 %v395, %v395
          %v428 = vpack.c.bf16 %v396, %v396
          %v429 = vpack.c.bf16 %v397, %v397
          %v430 = vpack.c.bf16 %v398, %v398
          %v431 = vpack.c.bf16 %v399, %v399
          %v432 = vpack.c.bf16 %v400, %v400
          %v433 = vpack.c.bf16 %v401, %v401
          %v434 = vpack.c.bf16 %v402, %v402
          %v435 = vpack.c.bf16 %v403, %v403
          %v436 = vpack.c.bf16 %v404, %v404
          %v437 = vpack.c.bf16 %v405, %v405
          %438 = vst [vmem:[#allocation2] sm:$0xf] %v406
          %439 = vst [vmem:[#allocation2 + $0x4] sm:$0xf] %v407
          %440 = vst [vmem:[#allocation2 + $0x8] sm:$0xf] %v408
          %441 = vst [vmem:[#allocation2 + $0xc] sm:$0xf] %v409
          %442 = vst [vmem:[#allocation2 + $0x10] sm:$0xf] %v410
          %443 = vst [vmem:[#allocation2 + $0x14] sm:$0xf] %v411
          %444 = vst [vmem:[#allocation2 + $0x18] sm:$0xf] %v412
          %445 = vst [vmem:[#allocation2 + $0x1c] sm:$0xf] %v413
          %446 = vst [vmem:[#allocation2 + $0x20] sm:$0xf] %v414
          %447 = vst [vmem:[#allocation2 + $0x24] sm:$0xf] %v415
          %448 = vst [vmem:[#allocation2 + $0x28] sm:$0xf] %v416
          %449 = vst [vmem:[#allocation2 + $0x2c] sm:$0xf] %v417
          %450 = vst [vmem:[#allocation2 + $0x30] sm:$0xf] %v418
          %451 = vst [vmem:[#allocation2 + $0x34] sm:$0xf] %v419
          %452 = vst [vmem:[#allocation2 + $0x38] sm:$0xf] %v420
          %453 = vst [vmem:[#allocation2 + $0x3c] sm:$0xf] %v421
          %454 = vst [vmem:[#allocation2 + $0x40] sm:$0xf] %v422
          %455 = vst [vmem:[#allocation2 + $0x44] sm:$0xf] %v423
          %456 = vst [vmem:[#allocation2 + $0x48] sm:$0xf] %v424
          %457 = vst [vmem:[#allocation2 + $0x4c] sm:$0xf] %v425
          %458 = vst [vmem:[#allocation2 + $0x50] sm:$0xf] %v426
          %459 = vst [vmem:[#allocation2 + $0x54] sm:$0xf] %v427
          %460 = vst [vmem:[#allocation2 + $0x58] sm:$0xf] %v428
          %461 = vst [vmem:[#allocation2 + $0x5c] sm:$0xf] %v429
          %462 = vst [vmem:[#allocation2 + $0x60] sm:$0xf] %v430
          %463 = vst [vmem:[#allocation2 + $0x64] sm:$0xf] %v431
          %464 = vst [vmem:[#allocation2 + $0x68] sm:$0xf] %v432
          %465 = vst [vmem:[#allocation2 + $0x6c] sm:$0xf] %v433
          %466 = vst [vmem:[#allocation2 + $0x70] sm:$0xf] %v434
          %467 = vst [vmem:[#allocation2 + $0x74] sm:$0xf] %v435
          %468 = vst [vmem:[#allocation2 + $0x78] sm:$0xf] %v436
          %469 = vst [vmem:[#allocation2 + $0x7c] sm:$0xf] %v437
        $region60: #{tpu_custom_call.1} parent=39 // pred_fallthru
          _
        %v470 = vld [vmem:[%s303] sm:$0xff]
        %v471 = vld [vmem:[%s303 + $0x8] sm:$0xff]
        %v472 = vld [vmem:[%s303 + $0x10] sm:$0xff]
        %v473 = vld [vmem:[%s303 + $0x18] sm:$0xff]
        %v474 = vld [vmem:[%s303 + $0x20] sm:$0xff]
        %v475 = vld [vmem:[%s303 + $0x28] sm:$0xff]
        %v476 = vld [vmem:[%s303 + $0x30] sm:$0xff]
        %v477 = vld [vmem:[%s303 + $0x38] sm:$0xff]
        %v478 = vld [vmem:[%s303 + $0x40] sm:$0xff]
        %v479 = vld [vmem:[%s303 + $0x48] sm:$0xff]
        %v480 = vld [vmem:[%s303 + $0x50] sm:$0xff]
        %v481 = vld [vmem:[%s303 + $0x58] sm:$0xff]
        %v482 = vld [vmem:[%s303 + $0x60] sm:$0xff]
        %v483 = vld [vmem:[%s303 + $0x68] sm:$0xff]
        %v484 = vld [vmem:[%s303 + $0x70] sm:$0xff]
        %v485 = vld [vmem:[%s303 + $0x78] sm:$0xff]
        %v486 = vld [vmem:[#allocation2] sm:$0xf]
        %v487 = vld [vmem:[#allocation2 + $0x4] sm:$0xf]
        %v488 = vld [vmem:[#allocation2 + $0x8] sm:$0xf]
        %v489 = vld [vmem:[#allocation2 + $0xc] sm:$0xf]
        %v490 = vld [vmem:[#allocation2 + $0x10] sm:$0xf]
        %v491 = vld [vmem:[#allocation2 + $0x14] sm:$0xf]
        %v492 = vld [vmem:[#allocation2 + $0x18] sm:$0xf]
        %v493 = vld [vmem:[#allocation2 + $0x1c] sm:$0xf]
        %v494 = vld [vmem:[#allocation2 + $0x20] sm:$0xf]
        %v495 = vld [vmem:[#allocation2 + $0x24] sm:$0xf]
        %v496 = vld [vmem:[#allocation2 + $0x28] sm:$0xf]
        %v497 = vld [vmem:[#allocation2 + $0x2c] sm:$0xf]
        %v498 = vld [vmem:[#allocation2 + $0x30] sm:$0xf]
        %v499 = vld [vmem:[#allocation2 + $0x34] sm:$0xf]
        %v500 = vld [vmem:[#allocation2 + $0x38] sm:$0xf]
        %v501 = vld [vmem:[#allocation2 + $0x3c] sm:$0xf]
        %v502 = vld [vmem:[#allocation2 + $0x40] sm:$0xf]
        %v503 = vld [vmem:[#allocation2 + $0x44] sm:$0xf]
        %v504 = vld [vmem:[#allocation2 + $0x48] sm:$0xf]
        %v505 = vld [vmem:[#allocation2 + $0x4c] sm:$0xf]
        %v506 = vld [vmem:[#allocation2 + $0x50] sm:$0xf]
        %v507 = vld [vmem:[#allocation2 + $0x54] sm:$0xf]
        %v508 = vld [vmem:[#allocation2 + $0x58] sm:$0xf]
        %v509 = vld [vmem:[#allocation2 + $0x5c] sm:$0xf]
        %v510 = vld [vmem:[#allocation2 + $0x60] sm:$0xf]
        %v511 = vld [vmem:[#allocation2 + $0x64] sm:$0xf]
        %v512 = vld [vmem:[#allocation2 + $0x68] sm:$0xf]
        %v513 = vld [vmem:[#allocation2 + $0x6c] sm:$0xf]
        %v514 = vld [vmem:[#allocation2 + $0x70] sm:$0xf]
        %v515 = vld [vmem:[#allocation2 + $0x74] sm:$0xf]
        %v516 = vld [vmem:[#allocation2 + $0x78] sm:$0xf]
        %v517 = vld [vmem:[#allocation2 + $0x7c] sm:$0xf]
        %v534 = vunpack.c.l.b16 %v470
        %v535 = vunpack.c.h.b16 %v470
        %v536 = vunpack.c.l.b16 %v471
        %v537 = vunpack.c.h.b16 %v471
        %v538 = vunpack.c.l.b16 %v472
        %v539 = vunpack.c.h.b16 %v472
        %v540 = vunpack.c.l.b16 %v473
        %v541 = vunpack.c.h.b16 %v473
        %v542 = vunpack.c.l.b16 %v474
        %v543 = vunpack.c.h.b16 %v474
        %v544 = vunpack.c.l.b16 %v475
        %v545 = vunpack.c.h.b16 %v475
        %v546 = vunpack.c.l.b16 %v476
        %v547 = vunpack.c.h.b16 %v476
        %v548 = vunpack.c.l.b16 %v477
        %v549 = vunpack.c.h.b16 %v477
        %v550 = vunpack.c.l.b16 %v478
        %v551 = vunpack.c.h.b16 %v478
        %v552 = vunpack.c.l.b16 %v479
        %v553 = vunpack.c.h.b16 %v479
        %v554 = vunpack.c.l.b16 %v480
        %v555 = vunpack.c.h.b16 %v480
        %v556 = vunpack.c.l.b16 %v481
        %v557 = vunpack.c.h.b16 %v481
        %v558 = vunpack.c.l.b16 %v482
        %v559 = vunpack.c.h.b16 %v482
        %v560 = vunpack.c.l.b16 %v483
        %v561 = vunpack.c.h.b16 %v483
        %v562 = vunpack.c.l.b16 %v484
        %v563 = vunpack.c.h.b16 %v484
        %v564 = vunpack.c.l.b16 %v485
        %v565 = vunpack.c.h.b16 %v485
        %v566 = vpack.c.b16 %v536, %v534
        %v567 = vpack.c.b16 %v537, %v535
        %v568 = vpack.c.b16 %v540, %v538
        %v569 = vpack.c.b16 %v541, %v539
        %v570 = vpack.c.b16 %v544, %v542
        %v571 = vpack.c.b16 %v545, %v543
        %v572 = vpack.c.b16 %v548, %v546
        %v573 = vpack.c.b16 %v549, %v547
        %v574 = vpack.c.b16 %v552, %v550
        %v575 = vpack.c.b16 %v553, %v551
        %v576 = vpack.c.b16 %v556, %v554
        %v577 = vpack.c.b16 %v557, %v555
        %v578 = vpack.c.b16 %v560, %v558
        %v579 = vpack.c.b16 %v561, %v559
        %v580 = vpack.c.b16 %v564, %v562
        %v581 = vpack.c.b16 %v565, %v563
        %v630 = vunpack.c.l.b16 %v486
        %v631 = vunpack.c.l.b16 %v487
        %v632 = vunpack.c.l.b16 %v488
        %v633 = vunpack.c.l.b16 %v489
        %v634 = vunpack.c.l.b16 %v490
        %v635 = vunpack.c.l.b16 %v491
        %v636 = vunpack.c.l.b16 %v492
        %v637 = vunpack.c.l.b16 %v493
        %v638 = vunpack.c.l.b16 %v494
        %v639 = vunpack.c.l.b16 %v495
        %v640 = vunpack.c.l.b16 %v496
        %v641 = vunpack.c.l.b16 %v497
        %v642 = vunpack.c.l.b16 %v498
        %v643 = vunpack.c.l.b16 %v499
        %v644 = vunpack.c.l.b16 %v500
        %v645 = vunpack.c.l.b16 %v501
        %v646 = vunpack.c.l.b16 %v502
        %v647 = vunpack.c.l.b16 %v503
        %v648 = vunpack.c.l.b16 %v504
        %v649 = vunpack.c.l.b16 %v505
        %v650 = vunpack.c.l.b16 %v506
        %v651 = vunpack.c.l.b16 %v507
        %v652 = vunpack.c.l.b16 %v508
        %v653 = vunpack.c.l.b16 %v509
        %v654 = vunpack.c.l.b16 %v510
        %v655 = vunpack.c.l.b16 %v511
        %v656 = vunpack.c.l.b16 %v512
        %v657 = vunpack.c.l.b16 %v513
        %v658 = vunpack.c.l.b16 %v514
        %v659 = vunpack.c.l.b16 %v515
        %v660 = vunpack.c.l.b16 %v516
        %v661 = vunpack.c.l.b16 %v517
        %v662 = vpack.c.b16 %v631, %v630
        %v663 = vpack.c.b16 %v633, %v632
        %v664 = vpack.c.b16 %v635, %v634
        %v665 = vpack.c.b16 %v637, %v636
        %v666 = vpack.c.b16 %v639, %v638
        %v667 = vpack.c.b16 %v641, %v640
        %v668 = vpack.c.b16 %v643, %v642
        %v669 = vpack.c.b16 %v645, %v644
        %v670 = vpack.c.b16 %v647, %v646
        %v671 = vpack.c.b16 %v649, %v648
        %v672 = vpack.c.b16 %v651, %v650
        %v673 = vpack.c.b16 %v653, %v652
        %v674 = vpack.c.b16 %v655, %v654
        %v675 = vpack.c.b16 %v657, %v656
        %v676 = vpack.c.b16 %v659, %v658
        %v677 = vpack.c.b16 %v661, %v660
        %694 = vmatpush.bf16.msra.mxu0 %v669
        %695 = vmatpush.bf16.msra.mxu0 %v668
        %696 = vmatpush.bf16.msra.mxu0 %v667
        %697 = vmatpush.bf16.msra.mxu0 %v666
        %698 = vmatpush.bf16.msra.mxu0 %v665
        %699 = vmatpush.bf16.msra.mxu0 %v664
        %700 = vmatpush.bf16.msra.mxu0 %v663
        %701 = vmatpush.bf16.msra.mxu0 %v662
        %702 = vmatmul.bf16.gmra.mxu0 %v566
        %v703 = vpop.f32.mrf.mxu0
        %v704 = vadd.f32 0.0, %v703
        %v705 = vpop.f32.mrf.mxu0
        %v706 = vadd.f32 0.0, %v705
        %707 = vmatmul.bf16.gmra.mxu0 %v568
        %v708 = vpop.f32.mrf.mxu0
        %v709 = vadd.f32 0.0, %v708
        %v710 = vpop.f32.mrf.mxu0
        %v711 = vadd.f32 0.0, %v710
        %712 = vmatmul.bf16.gmra.mxu0 %v570
        %v713 = vpop.f32.mrf.mxu0
        %v714 = vadd.f32 0.0, %v713
        %v715 = vpop.f32.mrf.mxu0
        %v716 = vadd.f32 0.0, %v715
        %717 = vmatmul.bf16.gmra.mxu0 %v572
        %v718 = vpop.f32.mrf.mxu0
        %v719 = vadd.f32 0.0, %v718
        %v720 = vpop.f32.mrf.mxu0
        %v721 = vadd.f32 0.0, %v720
        %722 = vmatmul.bf16.gmra.mxu0 %v574
        %v723 = vpop.f32.mrf.mxu0
        %v724 = vadd.f32 0.0, %v723
        %v725 = vpop.f32.mrf.mxu0
        %v726 = vadd.f32 0.0, %v725
        %727 = vmatmul.bf16.gmra.mxu0 %v576
        %v728 = vpop.f32.mrf.mxu0
        %v729 = vadd.f32 0.0, %v728
        %v730 = vpop.f32.mrf.mxu0
        %v731 = vadd.f32 0.0, %v730
        %732 = vmatmul.bf16.gmra.mxu0 %v578
        %v733 = vpop.f32.mrf.mxu0
        %v734 = vadd.f32 0.0, %v733
        %v735 = vpop.f32.mrf.mxu0
        %v736 = vadd.f32 0.0, %v735
        %737 = vmatmul.bf16.gmra.mxu0 %v580
        %v738 = vpop.f32.mrf.mxu0
        %v739 = vadd.f32 0.0, %v738
        %v740 = vpop.f32.mrf.mxu0
        %v741 = vadd.f32 0.0, %v740
        %742 = vdwg.mxu0
        %743 = vmatpush.bf16.msra.mxu0 %v677
        %744 = vmatpush.bf16.msra.mxu0 %v676
        %745 = vmatpush.bf16.msra.mxu0 %v675
        %746 = vmatpush.bf16.msra.mxu0 %v674
        %747 = vmatpush.bf16.msra.mxu0 %v673
        %748 = vmatpush.bf16.msra.mxu0 %v672
        %749 = vmatpush.bf16.msra.mxu0 %v671
        %750 = vmatpush.bf16.msra.mxu0 %v670
        %751 = vmatmul.bf16.gmra.mxu0 %v567
        %v752 = vpop.f32.mrf.mxu0
        %v753 = vadd.f32 %v704, %v752
        %v754 = vpop.f32.mrf.mxu0
        %v755 = vadd.f32 %v706, %v754
        %756 = vmatmul.bf16.gmra.mxu0 %v569
        %v757 = vpop.f32.mrf.mxu0
        %v758 = vadd.f32 %v709, %v757
        %v759 = vpop.f32.mrf.mxu0
        %v760 = vadd.f32 %v711, %v759
        %761 = vmatmul.bf16.gmra.mxu0 %v571
        %v762 = vpop.f32.mrf.mxu0
        %v763 = vadd.f32 %v714, %v762
        %v764 = vpop.f32.mrf.mxu0
        %v765 = vadd.f32 %v716, %v764
        %766 = vmatmul.bf16.gmra.mxu0 %v573
        %v767 = vpop.f32.mrf.mxu0
        %v768 = vadd.f32 %v719, %v767
        %v769 = vpop.f32.mrf.mxu0
        %v770 = vadd.f32 %v721, %v769
        %771 = vmatmul.bf16.gmra.mxu0 %v575
        %v772 = vpop.f32.mrf.mxu0
        %v773 = vadd.f32 %v724, %v772
        %v774 = vpop.f32.mrf.mxu0
        %v775 = vadd.f32 %v726, %v774
        %776 = vmatmul.bf16.gmra.mxu0 %v577
        %v777 = vpop.f32.mrf.mxu0
        %v778 = vadd.f32 %v729, %v777
        %v779 = vpop.f32.mrf.mxu0
        %v780 = vadd.f32 %v731, %v779
        %781 = vmatmul.bf16.gmra.mxu0 %v579
        %v782 = vpop.f32.mrf.mxu0
        %v783 = vadd.f32 %v734, %v782
        %v784 = vpop.f32.mrf.mxu0
        %v785 = vadd.f32 %v736, %v784
        %786 = vmatmul.bf16.gmra.mxu0 %v581
        %v787 = vpop.f32.mrf.mxu0
        %v788 = vadd.f32 %v739, %v787
        %v789 = vpop.f32.mrf.mxu0
        %v790 = vadd.f32 %v741, %v789
        %791 = vdwg.mxu0
        %v792 = vld [vmem:[%s323] sm:$0xff]
        %v793 = vld [vmem:[%s323 + $0x8] sm:$0xff]
        %v794 = vld [vmem:[%s323 + $0x10] sm:$0xff]
        %v795 = vld [vmem:[%s323 + $0x18] sm:$0xff]
        %v796 = vld [vmem:[%s323 + $0x20] sm:$0xff]
        %v797 = vld [vmem:[%s323 + $0x28] sm:$0xff]
        %v798 = vld [vmem:[%s323 + $0x30] sm:$0xff]
        %v799 = vld [vmem:[%s323 + $0x38] sm:$0xff]
        %v800 = vld [vmem:[%s323 + $0x40] sm:$0xff]
        %v801 = vld [vmem:[%s323 + $0x48] sm:$0xff]
        %v802 = vld [vmem:[%s323 + $0x50] sm:$0xff]
        %v803 = vld [vmem:[%s323 + $0x58] sm:$0xff]
        %v804 = vld [vmem:[%s323 + $0x60] sm:$0xff]
        %v805 = vld [vmem:[%s323 + $0x68] sm:$0xff]
        %v806 = vld [vmem:[%s323 + $0x70] sm:$0xff]
        %v807 = vld [vmem:[%s323 + $0x78] sm:$0xff]
        %v808 = vld [vmem:[%s367] sm:$0x1]
        %v810 = vperm.slane %v808, 0
        %812 = vmatpush.msra.mxu0 %v807
        %813 = vmatpush.msra.mxu0 %v806
        %814 = vmatpush.msra.mxu0 %v805
        %815 = vmatpush.msra.mxu0 %v804
        %816 = vmatpush.msra.mxu0 %v803
        %817 = vmatpush.msra.mxu0 %v802
        %818 = vmatpush.msra.mxu0 %v801
        %819 = vmatpush.msra.mxu0 %v800
        %820 = vmatpush.msra.mxu0 %v799
        %821 = vmatpush.msra.mxu0 %v798
        %822 = vmatpush.msra.mxu0 %v797
        %823 = vmatpush.msra.mxu0 %v796
        %824 = vmatpush.msra.mxu0 %v795
        %825 = vmatpush.msra.mxu0 %v794
        %826 = vmatpush.msra.mxu0 %v793
        %827 = vmatpush.msra.mxu0 %v792
        %828 = vmatmul.f32.gmra.mxu0 %v753
        %v829 = vpop.f32.mrf.mxu0
        %v830 = vadd.f32 %v810, %v829
        %831 = vmatmul.f32.gmra.mxu0 %v755
        %v832 = vpop.f32.mrf.mxu0
        %v833 = vadd.f32 %v810, %v832
        %834 = vmatmul.f32.gmra.mxu0 %v758
        %v835 = vpop.f32.mrf.mxu0
        %v836 = vadd.f32 %v810, %v835
        %837 = vmatmul.f32.gmra.mxu0 %v760
        %v838 = vpop.f32.mrf.mxu0
        %v839 = vadd.f32 %v810, %v838
        %840 = vmatmul.f32.gmra.mxu0 %v763
        %v841 = vpop.f32.mrf.mxu0
        %v842 = vadd.f32 %v810, %v841
        %843 = vmatmul.f32.gmra.mxu0 %v765
        %v844 = vpop.f32.mrf.mxu0
        %v845 = vadd.f32 %v810, %v844
        %846 = vmatmul.f32.gmra.mxu0 %v768
        %v847 = vpop.f32.mrf.mxu0
        %v848 = vadd.f32 %v810, %v847
        %849 = vmatmul.f32.gmra.mxu0 %v770
        %v850 = vpop.f32.mrf.mxu0
        %v851 = vadd.f32 %v810, %v850
        %852 = vmatmul.f32.gmra.mxu0 %v773
        %v853 = vpop.f32.mrf.mxu0
        %v854 = vadd.f32 %v810, %v853
        %855 = vmatmul.f32.gmra.mxu0 %v775
        %v856 = vpop.f32.mrf.mxu0
        %v857 = vadd.f32 %v810, %v856
        %858 = vmatmul.f32.gmra.mxu0 %v778
        %v859 = vpop.f32.mrf.mxu0
        %v860 = vadd.f32 %v810, %v859
        %861 = vmatmul.f32.gmra.mxu0 %v780
        %v862 = vpop.f32.mrf.mxu0
        %v863 = vadd.f32 %v810, %v862
        %864 = vmatmul.f32.gmra.mxu0 %v783
        %v865 = vpop.f32.mrf.mxu0
        %v866 = vadd.f32 %v810, %v865
        %867 = vmatmul.f32.gmra.mxu0 %v785
        %v868 = vpop.f32.mrf.mxu0
        %v869 = vadd.f32 %v810, %v868
        %870 = vmatmul.f32.gmra.mxu0 %v788
        %v871 = vpop.f32.mrf.mxu0
        %v872 = vadd.f32 %v810, %v871
        %873 = vmatmul.f32.gmra.mxu0 %v790
        %v874 = vpop.f32.mrf.mxu0
        %v875 = vadd.f32 %v810, %v874
        %876 = vdwg.mxu0
        %v877 = vmax.f32 %v830, 0.0
        %v878 = vmax.f32 %v833, 0.0
        %v879 = vmax.f32 %v836, 0.0
        %v880 = vmax.f32 %v839, 0.0
        %v881 = vmax.f32 %v842, 0.0
        %v882 = vmax.f32 %v845, 0.0
        %v883 = vmax.f32 %v848, 0.0
        %v884 = vmax.f32 %v851, 0.0
        %v885 = vmax.f32 %v854, 0.0
        %v886 = vmax.f32 %v857, 0.0
        %v887 = vmax.f32 %v860, 0.0
        %v888 = vmax.f32 %v863, 0.0
        %v889 = vmax.f32 %v866, 0.0
        %v890 = vmax.f32 %v869, 0.0
        %v891 = vmax.f32 %v872, 0.0
        %v892 = vmax.f32 %v875, 0.0
        %s893 = smul.u32 %s31, 128
        %v894 = vpack.c.bf16 %v877, %v877
        %v895 = vpack.c.bf16 %v878, %v878
        %v896 = vpack.c.bf16 %v879, %v879
        %v897 = vpack.c.bf16 %v880, %v880
        %v898 = vpack.c.bf16 %v881, %v881
        %v899 = vpack.c.bf16 %v882, %v882
        %v900 = vpack.c.bf16 %v883, %v883
        %v901 = vpack.c.bf16 %v884, %v884
        %v902 = vpack.c.bf16 %v885, %v885
        %v903 = vpack.c.bf16 %v886, %v886
        %v904 = vpack.c.bf16 %v887, %v887
        %v905 = vpack.c.bf16 %v888, %v888
        %v906 = vpack.c.bf16 %v889, %v889
        %v907 = vpack.c.bf16 %v890, %v890
        %v908 = vpack.c.bf16 %v891, %v891
        %v909 = vpack.c.bf16 %v892, %v892
        %s910 = sshra.s32 %s893, 3
        %s911 = sand.u32 %s893, 7
        %s912 = smul.addr %s910, 4
        %s913 = scalar_lea.vmem [#allocation3], %s912
        %914 = vst [vmem:[%s913] sm:$0xf] %v894
        %915 = vst [vmem:[%s913 + $0x4] sm:$0xf] %v895
        %916 = vst [vmem:[%s913 + $0x8] sm:$0xf] %v896
        %917 = vst [vmem:[%s913 + $0xc] sm:$0xf] %v897
        %918 = vst [vmem:[%s913 + $0x10] sm:$0xf] %v898
        %919 = vst [vmem:[%s913 + $0x14] sm:$0xf] %v899
        %920 = vst [vmem:[%s913 + $0x18] sm:$0xf] %v900
        %921 = vst [vmem:[%s913 + $0x1c] sm:$0xf] %v901
        %922 = vst [vmem:[%s913 + $0x20] sm:$0xf] %v902
        %923 = vst [vmem:[%s913 + $0x24] sm:$0xf] %v903
        %924 = vst [vmem:[%s913 + $0x28] sm:$0xf] %v904
        %925 = vst [vmem:[%s913 + $0x2c] sm:$0xf] %v905
        %926 = vst [vmem:[%s913 + $0x30] sm:$0xf] %v906
        %927 = vst [vmem:[%s913 + $0x34] sm:$0xf] %v907
        %928 = vst [vmem:[%s913 + $0x38] sm:$0xf] %v908
        %929 = vst [vmem:[%s913 + $0x3c] sm:$0xf] %v909
        %v930 = vld [vmem:[%s313] sm:$0xf]
        %931 = vmatpush.msra.mxu0 %v892
        %932 = vmatpush.msra.mxu0 %v891
        %933 = vmatpush.msra.mxu0 %v890
        %934 = vmatpush.msra.mxu0 %v889
        %935 = vmatpush.msra.mxu0 %v888
        %936 = vmatpush.msra.mxu0 %v887
        %937 = vmatpush.msra.mxu0 %v886
        %938 = vmatpush.msra.mxu0 %v885
        %939 = vmatpush.msra.mxu0 %v884
        %940 = vmatpush.msra.mxu0 %v883
        %941 = vmatpush.msra.mxu0 %v882
        %942 = vmatpush.msra.mxu0 %v881
        %943 = vmatpush.msra.mxu0 %v880
        %944 = vmatpush.msra.mxu0 %v879
        %945 = vmatpush.msra.mxu0 %v878
        %946 = vmatpush.msra.mxu0 %v877
        %947 = vmatmul.bf16.gmra.mxu0 %v930
        %v948 = vpop.f32.mrf.mxu0
        %v949 = vadd.f32 0.0, %v948
        %v950 = vpop.f32.mrf.mxu0
        %951 = vdwg.mxu0
        // Predicated region
        $region61: #{tpu_custom_call.1} parent=39 // pred_check
          %p952 = pneg %p369
        $region62: #{tpu_custom_call.1} parent=39 // pred_check_branch
          %954 = sbr.rel (%p952) target = $region64
        $region63: #{tpu_custom_call.1} parent=39 // pred_region
          %955 = vst [vmem:[%s363] sm:$0xff] 0.0
        $region64: #{tpu_custom_call.1} parent=39 // pred_fallthru
          _
        %v956 = vld [vmem:[%s363] sm:$0xff]
        %v957 = vadd.f32 %v956, %v949
        %958 = vst [vmem:[%s363] sm:$0xff] %v957
        %p959 = scmp.eq.s32.totalorder %s31, 1
        %p960 = scmp.lt.s32.totalorder %s30, 2
        %p961 = pnand %p959, %p960
        %p962 = pneg %p961
        // Predicated region
        $region65: #{tpu_custom_call.1} parent=39 // pred_check
          _
        $region66: #{tpu_custom_call.1} parent=39 // pred_check_branch
          %964 = sbr.rel (%p961) target = $region68
        $region67: #{tpu_custom_call.1} parent=39 // pred_region
          %v965 = vld [vmem:[#allocation3] sm:$0xf]
          %v966 = vld [vmem:[#allocation3 + $0x4] sm:$0xf]
          %v967 = vld [vmem:[#allocation3 + $0x8] sm:$0xf]
          %v968 = vld [vmem:[#allocation3 + $0xc] sm:$0xf]
          %v969 = vld [vmem:[#allocation3 + $0x10] sm:$0xf]
          %v970 = vld [vmem:[#allocation3 + $0x14] sm:$0xf]
          %v971 = vld [vmem:[#allocation3 + $0x18] sm:$0xf]
          %v972 = vld [vmem:[#allocation3 + $0x1c] sm:$0xf]
          %v973 = vld [vmem:[#allocation3 + $0x20] sm:$0xf]
          %v974 = vld [vmem:[#allocation3 + $0x24] sm:$0xf]
          %v975 = vld [vmem:[#allocation3 + $0x28] sm:$0xf]
          %v976 = vld [vmem:[#allocation3 + $0x2c] sm:$0xf]
          %v977 = vld [vmem:[#allocation3 + $0x30] sm:$0xf]
          %v978 = vld [vmem:[#allocation3 + $0x34] sm:$0xf]
          %v979 = vld [vmem:[#allocation3 + $0x38] sm:$0xf]
          %v980 = vld [vmem:[#allocation3 + $0x3c] sm:$0xf]
          %v981 = vld [vmem:[#allocation3 + $0x40] sm:$0xf]
          %v982 = vld [vmem:[#allocation3 + $0x44] sm:$0xf]
          %v983 = vld [vmem:[#allocation3 + $0x48] sm:$0xf]
          %v984 = vld [vmem:[#allocation3 + $0x4c] sm:$0xf]
          %v985 = vld [vmem:[#allocation3 + $0x50] sm:$0xf]
          %v986 = vld [vmem:[#allocation3 + $0x54] sm:$0xf]
          %v987 = vld [vmem:[#allocation3 + $0x58] sm:$0xf]
          %v988 = vld [vmem:[#allocation3 + $0x5c] sm:$0xf]
          %v989 = vld [vmem:[#allocation3 + $0x60] sm:$0xf]
          %v990 = vld [vmem:[#allocation3 + $0x64] sm:$0xf]
          %v991 = vld [vmem:[#allocation3 + $0x68] sm:$0xf]
          %v992 = vld [vmem:[#allocation3 + $0x6c] sm:$0xf]
          %v993 = vld [vmem:[#allocation3 + $0x70] sm:$0xf]
          %v994 = vld [vmem:[#allocation3 + $0x74] sm:$0xf]
          %v995 = vld [vmem:[#allocation3 + $0x78] sm:$0xf]
          %v996 = vld [vmem:[#allocation3 + $0x7c] sm:$0xf]
          %997 = vst [vmem:[#allocation2] sm:$0xf] %v965
          %998 = vst [vmem:[#allocation2 + $0x4] sm:$0xf] %v966
          %999 = vst [vmem:[#allocation2 + $0x8] sm:$0xf] %v967
          %1000 = vst [vmem:[#allocation2 + $0xc] sm:$0xf] %v968
          %1001 = vst [vmem:[#allocation2 + $0x10] sm:$0xf] %v969
          %1002 = vst [vmem:[#allocation2 + $0x14] sm:$0xf] %v970
          %1003 = vst [vmem:[#allocation2 + $0x18] sm:$0xf] %v971
          %1004 = vst [vmem:[#allocation2 + $0x1c] sm:$0xf] %v972
          %1005 = vst [vmem:[#allocation2 + $0x20] sm:$0xf] %v973
          %1006 = vst [vmem:[#allocation2 + $0x24] sm:$0xf] %v974
          %1007 = vst [vmem:[#allocation2 + $0x28] sm:$0xf] %v975
          %1008 = vst [vmem:[#allocation2 + $0x2c] sm:$0xf] %v976
          %1009 = vst [vmem:[#allocation2 + $0x30] sm:$0xf] %v977
          %1010 = vst [vmem:[#allocation2 + $0x34] sm:$0xf] %v978
          %1011 = vst [vmem:[#allocation2 + $0x38] sm:$0xf] %v979
          %1012 = vst [vmem:[#allocation2 + $0x3c] sm:$0xf] %v980
          %1013 = vst [vmem:[#allocation2 + $0x40] sm:$0xf] %v981
          %1014 = vst [vmem:[#allocation2 + $0x44] sm:$0xf] %v982
          %1015 = vst [vmem:[#allocation2 + $0x48] sm:$0xf] %v983
          %1016 = vst [vmem:[#allocation2 + $0x4c] sm:$0xf] %v984
          %1017 = vst [vmem:[#allocation2 + $0x50] sm:$0xf] %v985
          %1018 = vst [vmem:[#allocation2 + $0x54] sm:$0xf] %v986
          %1019 = vst [vmem:[#allocation2 + $0x58] sm:$0xf] %v987
          %1020 = vst [vmem:[#allocation2 + $0x5c] sm:$0xf] %v988
          %1021 = vst [vmem:[#allocation2 + $0x60] sm:$0xf] %v989
          %1022 = vst [vmem:[#allocation2 + $0x64] sm:$0xf] %v990
          %1023 = vst [vmem:[#allocation2 + $0x68] sm:$0xf] %v991
          %1024 = vst [vmem:[#allocation2 + $0x6c] sm:$0xf] %v992
          %1025 = vst [vmem:[#allocation2 + $0x70] sm:$0xf] %v993
          %1026 = vst [vmem:[#allocation2 + $0x74] sm:$0xf] %v994
          %1027 = vst [vmem:[#allocation2 + $0x78] sm:$0xf] %v995
          %1028 = vst [vmem:[#allocation2 + $0x7c] sm:$0xf] %v996
        $region68: #{tpu_custom_call.1} parent=39 // pred_fallthru
          _
        %s1029 = sand.u32 %s171, 1
        %s1030 = scalar_lea.sflag [#allocation6], %s1029
        %s1031 = sand.u32 %s171, 1
        %s1032 = smul.addr %s1031, 8
        %s1033 = scalar_lea.vmem [#allocation12], %s1032
        // Predicated region
        $region69: #{tpu_custom_call.1} parent=39 // pred_check
          %p1034 = pneg %p181
        $region70: #{tpu_custom_call.1} parent=39 // pred_check_branch
          %1036 = sbr.rel (%p1034) target = $region72
        $region71: #{tpu_custom_call.1} parent=39 // pred_region
          %1038 = vsyncadd %s1030, 0
          %s1039 = smul.addr %s30, 8
          %s1040 = scalar_lea.hbm %s5, %s1039
          %s1042 = sshll.u32 %s1033, 4
          %s1043 = int_to_ptr.vmem [resolvable:$true] %s1042
          %s1044 = sshll.u32 %s1040, 4
          %s1045 = int_to_ptr.hbm [resolvable:$true] %s1044
          %1047 = dma.vmem_to_hbm [thread:$0]  %s1043, 128, %s1045, %s1030
        $region72: #{tpu_custom_call.1} parent=39 // pred_fallthru
          _
      $region40: #{tpu_custom_call.1} parent=5 // pred_fallthru
        _
      %p1048 = scmp.le.s32.totalorder 2, %s21
      // Predicated region
      $region73: #{tpu_custom_call.1} parent=5 // pred_check
        %p1049 = pneg %p1048
      $region74: #{tpu_custom_call.1} parent=5 // pred_check_branch
        %1051 = sbr.rel (%p1049) target = $region76
      $region75: #{tpu_custom_call.1} parent=5 // pred_region
        %s1052 = ssub.s32 %s21, 2
        // Predicated region
        $region77: #{tpu_custom_call.1} parent=75 // pred_check
          %p1053 = pneg %p187
        $region78: #{tpu_custom_call.1} parent=75 // pred_check_branch
          %1055 = sbr.rel (%p1053) target = $region80
        $region79: #{tpu_custom_call.1} parent=75 // pred_region
          %s1056 = sand.u32 %s172, 1
          %s1057 = scalar_lea.sflag [#allocation6], %s1056
          %s1058 = sand.u32 %s172, 1
          %s1059 = smul.addr %s1058, 8
          %s1060 = scalar_lea.vmem [#allocation12], %s1059
          %1062 = dma.done %s1057, 128
        $region80: #{tpu_custom_call.1} parent=75 // pred_fallthru
          _
      $region76: #{tpu_custom_call.1} parent=5 // pred_fallthru
        _
    $region6: #{tpu_custom_call.1} parent=1 // loop_footer
      %s25 = sadd.s32 1, %s21
    $region7: #{tpu_custom_call.1} parent=1 // loop_footer_branch
      %20 = sbr.rel target = $region3
    $region8: #{tpu_custom_call.1} parent=1 // loop_exit
      _
    %1063 = vsyncpa [#allocation5], 1
    %s1064 = scalar_lea.sflag [#allocation5], 1
    %1065 = vsyncpa %s1064, 1
    %1066 = vsyncpa [#allocation8], 1
    %s1067 = scalar_lea.sflag [#allocation8], 1
    %1068 = vsyncpa %s1067, 1
    %1069 = vsyncpa [#allocation11], 1
    %s1070 = scalar_lea.sflag [#allocation11], 1
    %1071 = vsyncpa %s1070, 1
    %1072 = vsyncpa [#allocation6], 1
    %s1073 = scalar_lea.sflag [#allocation6], 1
    %1074 = vsyncpa %s1073, 1

</llo_original>
